<compile_context>
chip_gen: v5e
topology: v5e:2x2
jax: 0.10.0
libtpu: 0.0.40
codegen_flags: <defaults>
</compile_context>

<pallas_src>
import functools

import jax
import jax.numpy as jnp
from jax import lax
from jax.experimental import pallas as pl
from jax.experimental.pallas import tpu as pltpu


def _round_up(x, m):
    return ((x + m - 1) // m) * m


# ----------------------------------------------------------------------------
# Forward kernel (torch API): xui[b] = sum_k gu[b,k] * gi[b,k], lane-dense out
# ----------------------------------------------------------------------------
def _forward_kernel(gu_ref, gi_ref, xui_ref):
    prod = gu_ref[...] * gi_ref[...]                      # (tb, K)  VPU, f32
    # Reduce K on the MXU so the tb results land on the lane axis:
    #   (1, K) x (tb, K)^T -> (1, tb); store is a full-width (unmasked) vst.
    # DEFAULT precision (single bf16 MXU pass) -- consistent policy with the
    # propagation matmuls; error ~0.2% relative.
    ones = jnp.ones((1, prod.shape[1]), jnp.float32)
    row_dot = lax.dot_general(
        ones, prod,
        dimension_numbers=(((1,), (1,)), ((), ())),       # contract K with K
        preferred_element_type=jnp.float32)               # (1, tb)
    xui_ref[...] = row_dot[None]                          # (1, 1, tb)


def uuii_forward(gu_batch, gi_batch, *, block_rows=1024):
    """Pallas implementation of UUIIModel.forward((gu, gi)).

    Returns (xui, gamma_u, gamma_i); gamma_u / gamma_i are the (squeezed)
    inputs themselves -- no kernel pass-through copies.
    """
    gamma_u = gu_batch if gu_batch.ndim == 2 else gu_batch.reshape(gu_batch.shape[0], -1)
    gamma_i = gi_batch if gi_batch.ndim == 2 else gi_batch.reshape(gi_batch.shape[0], -1)
    B, K = gamma_u.shape

    b_pad128 = _round_up(B, 128)
    tb = min(block_rows, b_pad128)
    # v7x has 2 TensorCores sharded along "parallel" axes: prefer >=2 grid
    # steps when the batch allows it (no-op for small B and on v5e/v6e).
    if b_pad128 // tb < 2 and b_pad128 >= 256:
        tb = _round_up(b_pad128 // 2, 128)
    b_pad = _round_up(B, tb)

    gu_p = gamma_u if b_pad == B else jnp.pad(gamma_u, ((0, b_pad - B), (0, 0)))
    gi_p = gamma_i if b_pad == B else jnp.pad(gamma_i, ((0, b_pad - B), (0, 0)))
    grid = (b_pad // tb,)

    xui_tiles = pl.pallas_call(
        _forward_kernel,
        out_shape=jax.ShapeDtypeStruct((grid[0], 1, tb), jnp.float32),
        grid_spec=pltpu.PrefetchScalarGridSpec(
            num_scalar_prefetch=0,
            grid=grid,
            in_specs=[
                pl.BlockSpec((tb, K), lambda b: (b, 0)),
                pl.BlockSpec((tb, K), lambda b: (b, 0)),
            ],
            out_specs=pl.BlockSpec((1, 1, tb), lambda b: (b, 0, 0)),
        ),
        compiler_params=pltpu.CompilerParams(
            dimension_semantics=("parallel",)),
    )(gu_p, gi_p)

    xui = xui_tiles.reshape(-1)[:B]
    return xui, gamma_u, gamma_i


# ----------------------------------------------------------------------------
# Fused-gather forward: xui[b] = <gu_all[users[b]], gi_all[pos[b]]>
# Indices are scalar-prefetched into SMEM; rows are DMA-gathered straight from
# HBM into VMEM staging buffers (no (B,K) gather materialization in HBM).
# ----------------------------------------------------------------------------
def _forward_gather_kernel(users_ref, pos_ref, gu_hbm, gi_hbm, xui_ref,
                           gu_stage, gi_stage, sem):
    tb = gu_stage.shape[0]
    base = pl.program_id(0) * tb

    # Issue all row-gather DMAs, then drain; the DMA engine overlaps them.
    @pl.loop(0, tb)
    def _issue(r):
        u = users_ref[base + r]
        i = pos_ref[base + r]
        pltpu.make_async_copy(gu_hbm.at[pl.ds(u, 1)], gu_stage.at[pl.ds(r, 1)],
                              sem.at[0]).start()
        pltpu.make_async_copy(gi_hbm.at[pl.ds(i, 1)], gi_stage.at[pl.ds(r, 1)],
                              sem.at[1]).start()

    @pl.loop(0, tb)
    def _drain(r):
        # Only the copy shape matters for the wait amount (same for every row).
        pltpu.make_async_copy(gu_hbm.at[pl.ds(0, 1)], gu_stage.at[pl.ds(r, 1)],
                              sem.at[0]).wait()
        pltpu.make_async_copy(gi_hbm.at[pl.ds(0, 1)], gi_stage.at[pl.ds(r, 1)],
                              sem.at[1]).wait()

    prod = gu_stage[...] * gi_stage[...]                  # (tb, K)  VPU, f32
    ones = jnp.ones((1, prod.shape[1]), jnp.float32)
    row_dot = lax.dot_general(
        ones, prod,
        dimension_numbers=(((1,), (1,)), ((), ())),
        preferred_element_type=jnp.float32)               # (1, tb) lane-dense
    xui_ref[...] = row_dot[None]                          # (1, 1, tb)


def uuii_forward_gathered(gu_all, gi_all, users, pos, *, block_rows=256):
    """train_step-style forward: gathers the embedding rows inside the kernel.

    Returns (xui, gamma_u, gamma_i) matching UUIIModel.forward; gamma_u/gamma_i
    are plain XLA gathers, only materialized if the caller consumes them -- the
    xui hot path never touches them.
    """
    B = users.shape[0]
    K = gu_all.shape[1]
    assert gi_all.shape[1] == K

    b_pad128 = _round_up(B, 128)
    tb = min(block_rows, b_pad128)
    if b_pad128 // tb < 2 and b_pad128 >= 256:            # v7x: feed both TCs
        tb = _round_up(b_pad128 // 2, 128)
    b_pad = _round_up(B, tb)

    users_p = jnp.zeros((b_pad,), jnp.int32).at[:B].set(users.astype(jnp.int32))
    pos_p = jnp.zeros((b_pad,), jnp.int32).at[:B].set(pos.astype(jnp.int32))
    grid = (b_pad // tb,)

    xui_tiles = pl.pallas_call(
        _forward_gather_kernel,
        out_shape=jax.ShapeDtypeStruct((grid[0], 1, tb), jnp.float32),
        grid_spec=pltpu.PrefetchScalarGridSpec(
            num_scalar_prefetch=2,
            grid=grid,
            in_specs=[
                pl.BlockSpec(memory_space=pl.ANY),        # gu_all stays in HBM
                pl.BlockSpec(memory_space=pl.ANY),        # gi_all stays in HBM
            ],
            out_specs=pl.BlockSpec((1, 1, tb), lambda b, users, pos: (b, 0, 0)),
            scratch_shapes=[
                pltpu.VMEM((tb, K), gu_all.dtype),
                pltpu.VMEM((tb, K), gi_all.dtype),
                pltpu.SemaphoreType.DMA((2,)),
            ],
        ),
        compiler_params=pltpu.CompilerParams(
            dimension_semantics=("parallel",)),
    )(users_p, pos_p, gu_all, gi_all)

    xui = xui_tiles.reshape(-1)[:B]
    gamma_u = jnp.take(gu_all, users, axis=0)
    gamma_i = jnp.take(gi_all, pos, axis=0)
    return xui, gamma_u, gamma_i


# ----------------------------------------------------------------------------
# Tiled MXU matmul (graph propagation), optional fused row-L2-normalize.
# Accumulates directly into the (f32, k-resident) output block -- no scratch.
# ----------------------------------------------------------------------------
def _matmul_kernel(a_ref, b_ref, o_ref, *, normalize, eps):
    @pl.when(pl.program_id(2) == 0)
    def _init():
        o_ref[...] = jnp.zeros_like(o_ref)

    o_ref[...] += jnp.dot(a_ref[...], b_ref[...],
                          preferred_element_type=jnp.float32)

    if normalize:
        @pl.when(pl.program_id(2) == pl.num_programs(2) - 1)
        def _finalize():
            acc = o_ref[...]
            # torch F.normalize(p=2, dim=1): x / max(||x||_2, eps)
            #   == x * rsqrt(max(sum(x^2), eps^2))      (rsqrt rides the EUP)
            # Padded (all-zero) rows give 0 * (1/eps) == 0; padded columns add
            # 0 to the row norm -- both benign.
            sumsq = jnp.sum(acc * acc, axis=1, keepdims=True)
            o_ref[...] = acc * lax.rsqrt(jnp.maximum(sumsq, eps * eps))


def dense_matmul(a, b, *, normalize_rows=False, eps=1e-12, tm=512, tn=256, tk=2048):
    """a @ b on the MXU (f32 accumulation), tiled + pipelined; optional fused
    per-row L2 normalize. Pass a/b as bf16 to halve HBM read traffic (these
    matmuls are bandwidth-bound at arithmetic intensity ~N/2 flops/byte).

    Default tiles (512, 2048) keep the double-buffered footprint ~7 MiB --
    under the 32 MiB scoped-VMEM cap and under v7x's 64 MiB physical VMEM.
    Inputs are zero-padded to tile multiples, so partial tiles stay exact.
    """
    M, K = a.shape
    K2, N = b.shape
    assert K == K2
    tm = min(tm, _round_up(M, 8))
    tk = min(tk, _round_up(K, 128))
    if normalize_rows:
        tn = _round_up(N, 128)          # row norm needs the whole row per tile
    else:
        tn = min(tn, _round_up(N, 128))

    m_pad = _round_up(M, tm)
    # v7x megacore: prefer >=2 grid steps along the parallel M axis.
    if m_pad // tm < 2 and M >= 16:
        tm = _round_up((m_pad + 1) // 2, 8)
        m_pad = _round_up(M, tm)
    k_pad, n_pad = _round_up(K, tk), _round_up(N, tn)

    a_p = a if (m_pad, k_pad) == (M, K) else jnp.pad(a, ((0, m_pad - M), (0, k_pad - K)))
    b_p = b if (k_pad, n_pad) == (K, N) else jnp.pad(b, ((0, k_pad - K), (0, n_pad - N)))

    grid = (m_pad // tm, n_pad // tn, k_pad // tk)
    kernel = functools.partial(_matmul_kernel, normalize=normalize_rows, eps=eps)

    out = pl.pallas_call(
        kernel,
        out_shape=jax.ShapeDtypeStruct((m_pad, n_pad), jnp.float32),
        grid_spec=pltpu.PrefetchScalarGridSpec(
            num_scalar_prefetch=0,
            grid=grid,
            in_specs=[
                pl.BlockSpec((tm, tk), lambda i, j, k: (i, k)),
                pl.BlockSpec((tk, tn), lambda i, j, k: (k, j)),
            ],
            out_specs=pl.BlockSpec((tm, tn), lambda i, j, k: (i, j)),
        ),
        compiler_params=pltpu.CompilerParams(
            dimension_semantics=("parallel", "parallel", "arbitrary"),
            # 32 MiB cap is safe on every generation; re-derive against the
            # 64 MiB physical VMEM budget if tiles are grown further on v7x.
            vmem_limit_bytes=32 * 1024 * 1024),
    )(a_p, b_p)
    return out[:M, :N]


# ----------------------------------------------------------------------------
# JAX glue reproducing the model's embedding propagation.
# ----------------------------------------------------------------------------
def compute_normalized_laplacian(adj):
    deg = jnp.sum(adj, axis=-1)
    deg_inv_sqrt = jnp.power(deg, -0.5)
    deg_inv_sqrt = jnp.where(jnp.isinf(deg_inv_sqrt), 0.0, deg_inv_sqrt)
    return adj * deg_inv_sqrt[:, None] * deg_inv_sqrt[None, :]


def normalize_bipartite(r):
    """D_u^-1/2 R D_i^-1/2: the nonzero block of the symmetric-normalized
    bipartite adjacency [[0, Rn], [Rn^T, 0]] (never materialize the full adj)."""
    du = jnp.power(jnp.sum(r, axis=1), -0.5)
    du = jnp.where(jnp.isinf(du), 0.0, du)
    di = jnp.power(jnp.sum(r, axis=0), -0.5)
    di = jnp.where(jnp.isinf(di), 0.0, di)
    return r * du[:, None] * di[None, :]


def l2_normalize(x, axis=1, eps=1e-12):
    norm = jnp.sqrt(jnp.sum(x * x, axis=axis, keepdims=True))
    return x / jnp.maximum(norm, eps)


def propagate_embeddings(Gu, Gi, Gis, sim_ii_norm, r_norm, n_ii_layers, n_ui_layers):
    # Explicit bf16 operands: the matmuls are HBM-bound and TPU DEFAULT matmul
    # precision truncates to bf16 anyway, so shrink the HBM reads themselves.
    sim_bf = sim_ii_norm.astype(jnp.bfloat16)
    r_bf = r_norm.astype(jnp.bfloat16)
    rt_bf = r_bf.T                       # one-time transpose, reused per layer
    # TODO(synk): single-pass fusion of R@xi and R^T@xu per UI layer (stream R
    # once) -- requires a U x K VMEM-resident accumulator; not done here.

    # item-item propagation: LGConv(normalize=False) on dense sim == sim @ x
    gis = Gis
    for _ in range(n_ii_layers):
        gis = dense_matmul(sim_bf, gis.astype(jnp.bfloat16))

    # user-item propagation: bipartite adj is block-anti-diagonal, so
    #   adj @ [xu; xi] == [R_norm @ xi ; R_norm^T @ xu]
    # with the per-layer L2 normalize fused into the matmul epilogue.
    xu, xi = Gu, Gi
    sum_u, sum_i = Gu, Gi                # running sum -> mean over ego + layers
    for _ in range(n_ui_layers):
        new_u = dense_matmul(r_bf, xi.astype(jnp.bfloat16), normalize_rows=True)
        new_i = dense_matmul(rt_bf, xu.astype(jnp.bfloat16), normalize_rows=True)
        xu, xi = new_u, new_i
        sum_u = sum_u + xu
        sum_i = sum_i + xi
    gu = sum_u / (n_ui_layers + 1)
    gi = sum_i / (n_ui_layers + 1)
    return gu, gi + l2_normalize(gis, axis=1)


def propagate_embeddings_ref(Gu, Gi, Gis, sim, r, n_ii_layers, n_ui_layers):
    """Pure f32 JAX reference of the propagation (for validation only)."""
    gis = Gis
    for _ in range(n_ii_layers):
        gis = sim @ gis
    rt = r.T
    xu, xi = Gu, Gi
    sum_u, sum_i = Gu, Gi
    for _ in range(n_ui_layers):
        nu = l2_normalize(r @ xi)
        ni = l2_normalize(rt @ xu)
        xu, xi = nu, ni
        sum_u = sum_u + xu
        sum_i = sum_i + xi
    return sum_u / (n_ui_layers + 1), sum_i / (n_ui_layers + 1) + l2_normalize(gis)


def xavier_uniform(key, shape):
    fan_out, fan_in = shape
    bound = jnp.sqrt(6.0 / (fan_in + fan_out))
    return jax.random.uniform(key, shape, jnp.float32, -bound, bound)


# ----------------------------------------------------------------------------
# Driver
# ----------------------------------------------------------------------------
if __name__ == "__main__":
    key = jax.random.PRNGKey(0)
    num_users, num_items, embed_k = 8, 8, 32
    n_ii_layers, n_ui_layers = 2, 2
    batch = 4

    k_gu, k_gi, k_gis, k_sim, k_adj, k_u, k_p = jax.random.split(key, 7)

    Gu = xavier_uniform(k_gu, (num_users, embed_k))
    Gi = xavier_uniform(k_gi, (num_items, embed_k))
    Gis = xavier_uniform(k_gis, (num_items, embed_k))

    # dense symmetric nonnegative item-item similarity (normalized as in __init__)
    sim_raw = jax.random.uniform(k_sim, (num_items, num_items), jnp.float32)
    sim_ii_norm = compute_normalized_laplacian(0.5 * (sim_raw + sim_raw.T))

    # user-item interactions (nonzero block of the bipartite adjacency)
    r = (jax.random.uniform(k_adj, (num_users, num_items)) > 0.5).astype(jnp.float32)
    r_norm = normalize_bipartite(r)

    # propagation (Pallas tiled-matmul kernels, bf16 operands / f32 accumulate)
    gu_all, gi_all = propagate_embeddings(Gu, Gi, Gis, sim_ii_norm, r_norm,
                                          n_ii_layers, n_ui_layers)
    jax.block_until_ready((gu_all, gi_all))

    # loose-tolerance check vs pure f32 JAX reference (bf16 MXU operands)
    gu_ref, gi_ref = propagate_embeddings_ref(Gu, Gi, Gis, sim_ii_norm, r_norm,
                                              n_ii_layers, n_ui_layers)
    assert jnp.allclose(gu_all, gu_ref, rtol=5e-2, atol=5e-2), "gu propagation mismatch"
    assert jnp.allclose(gi_all, gi_ref, rtol=5e-2, atol=5e-2), "gi propagation mismatch"

    # a training-style batch: user / positive-item indices
    users = jax.random.randint(k_u, (batch,), 0, num_users)
    pos = jax.random.randint(k_p, (batch,), 0, num_items)

    # forward pass with the row gather fused into the kernel (hot path)
    xui, gamma_u, gamma_i = uuii_forward_gathered(gu_all, gi_all, users, pos)
    jax.block_until_ready(xui)

    gu_batch = gu_all[users]            # [batch, embed_k] (reference only)
    gi_batch = gi_all[pos]              # [batch, embed_k]
    ref = jnp.sum(gu_batch * gi_batch, axis=1)
    assert xui.shape == (batch,)
    assert jnp.allclose(xui, ref, rtol=2e-2, atol=2e-2), "fused-gather xui mismatch"
    assert gamma_u.shape == (batch, embed_k) and gamma_i.shape == (batch, embed_k)
    assert jnp.allclose(gamma_u, gu_batch) and jnp.allclose(gamma_i, gi_batch)

    # torch-API forward on pre-gathered rows (same kernel math)
    xui2, gamma_u2, gamma_i2 = uuii_forward(gu_batch, gi_batch)
    jax.block_until_ready((xui2, gamma_u2, gamma_i2))
    assert jnp.allclose(xui2, ref, rtol=2e-2, atol=2e-2), "xui mismatch vs reference"
    assert jnp.allclose(gamma_u2, gu_batch) and jnp.allclose(gamma_i2, gi_batch)

    print("KERNEL_OK")
</pallas_src>

<mosaic_0001>
module attributes {stable_mosaic.version = 11 : i64} {
  func.func @_matmul_kernel(%arg0: i32, %arg1: i32, %arg2: i32, %arg3: memref<8x128xbf16, #tpu.memory_space<vmem>>, %arg4: memref<128x128xbf16, #tpu.memory_space<vmem>>, %arg5: memref<8x128xf32, #tpu.memory_space<vmem>>) attributes {dimension_semantics = [#tpu.dimension_semantics<parallel>, #tpu.dimension_semantics<parallel>, #tpu.dimension_semantics<arbitrary>], iteration_bounds = array<i64: 1, 1, 1>, scalar_prefetch = 0 : i64, scratch_operands = 0 : i64, tpu.core_type = #tpu.core_type<tc>, window_params = [{transform_indices = @transform_0, window_bounds = array<i64: 8, 128>}, {transform_indices = @transform_1, window_bounds = array<i64: 128, 128>}, {transform_indices = @transform_2, window_bounds = array<i64: 8, 128>}]} {
    %c0_i32 = arith.constant 0 : i32
    %0 = arith.cmpi eq, %arg2, %c0_i32 : i32
    %1 = arith.extui %0 : i1 to i32
    %c0_i32_0 = arith.constant 0 : i32
    %2 = arith.cmpi ne, %1, %c0_i32_0 : i32
    scf.if %2 {
      %cst_8 = arith.constant 0.000000e+00 : f32
      %9 = vector.broadcast %cst_8 : f32 to vector<8x128xf32>
      %c0_9 = arith.constant 0 : index
      %c0_10 = arith.constant 0 : index
      %10 = vector.load %arg5[%c0_9, %c0_10] : memref<8x128xf32, #tpu.memory_space<vmem>>, vector<8x128xf32>
      tpu.vector_store %arg5[%c0_9, %c0_10], %9 {strides = array<i32>} : memref<8x128xf32, #tpu.memory_space<vmem>>, vector<8x128xf32>,
    } else {
    }
    %c0 = arith.constant 0 : index
    %c0_1 = arith.constant 0 : index
    %3 = vector.load %arg5[%c0, %c0_1] : memref<8x128xf32, #tpu.memory_space<vmem>>, vector<8x128xf32>
    %c0_2 = arith.constant 0 : index
    %c0_3 = arith.constant 0 : index
    %4 = vector.load %arg3[%c0_2, %c0_3] : memref<8x128xbf16, #tpu.memory_space<vmem>>, vector<8x128xbf16>
    %c0_4 = arith.constant 0 : index
    %c0_5 = arith.constant 0 : index
    %5 = vector.load %arg4[%c0_4, %c0_5] : memref<128x128xbf16, #tpu.memory_space<vmem>>, vector<128x128xbf16>
    %cst = arith.constant dense<0.000000e+00> : vector<8x128xf32>
    %6 = tpu.matmul %4, %5, %cst {dimension_numbers = #tpu.dot_dimension_numbers<[1], [0], [0], [1], [0, 0, 1, 1], [], []>} : vector<8x128xbf16>, vector<128x128xbf16>, vector<8x128xf32> -> vector<8x128xf32>
    %7 = arith.addf %3, %6 : vector<8x128xf32>
    %c0_6 = arith.constant 0 : index
    %c0_7 = arith.constant 0 : index
    %8 = vector.load %arg5[%c0_6, %c0_7] : memref<8x128xf32, #tpu.memory_space<vmem>>, vector<8x128xf32>
    tpu.vector_store %arg5[%c0_6, %c0_7], %7 {strides = array<i32>} : memref<8x128xf32, #tpu.memory_space<vmem>>, vector<8x128xf32>,
    return
  }
  func.func @transform_0(%arg0: i32, %arg1: i32, %arg2: i32) -> (i32, i32) {
    %c0_i32 = arith.constant 0 : i32
    return %arg0, %arg2 : i32, i32
  }
  func.func @transform_1(%arg0: i32, %arg1: i32, %arg2: i32) -> (i32, i32) {
    %c0_i32 = arith.constant 0 : i32
    return %arg2, %arg1 : i32, i32
  }
  func.func @transform_2(%arg0: i32, %arg1: i32, %arg2: i32) -> (i32, i32) {
    %c0_i32 = arith.constant 0 : i32
    return %arg0, %arg1 : i32, i32
  }
}

</mosaic_0001>

<llo_original>
// kernel: tpu_custom_call.1
$region0: #{tpu_custom_call.1}
  #allocation0 [shape = 'u32[]', space=smem, size = 0x4, offset = 0x4, fixed_abs, tag = 'smem constant byte address 0x4 - core index']
  #allocation1 [shape = 'u32[72,128]{1,0:T(1,128)}', space=vmem, size = 0x9000, scoped, tag = 'internal scratch']
  %s0 = inlined_call_operand.hbm [shape: bf16[8,128], index: 0, kind: input, shape index: {}]
  %s1 = inlined_call_operand.hbm [shape: bf16[128,128], index: 1, kind: input, shape index: {}]
  %s2 = inlined_call_operand.hbm [shape: f32[8,128], index: 2, kind: output, shape index: {}]
  %s3 = sld [smem:[#allocation0]]
  $region30: #{tpu_custom_call.1} parent=0
    _
  %s5 = ssub.s32 1, %s3
  %s6 = scalar_select 0, %s5, %s3
  $region1: #{tpu_custom_call.1} parent=0
    #allocation2 [shape = 'u8[2048]{0}', space=vmem, size = 0x800, scoped, tag = 'input window, operand 0, single buffered']
    #allocation3 [shape = 's32[1]{0}', space=sflag, size = 0x4, scoped, tag = 'scoped memory for tpu_custom_call.1']
    #allocation4 [shape = 's32[1]{0}', space=sflag, size = 0x4, scoped, tag = 'scoped memory for tpu_custom_call.1']
    #allocation5 [shape = 'u8[32768]{0}', space=vmem, size = 0x8000, scoped, tag = 'input window, operand 1, single buffered']
    #allocation6 [shape = 's32[1]{0}', space=sflag, size = 0x4, scoped, tag = 'scoped memory for tpu_custom_call.1']
    #allocation7 [shape = 'u8[4096]{0}', space=vmem, size = 0x1000, scoped, tag = 'output window, operand 0, single buffered']
    %7 = vsyncpa [#allocation3], 0
    %8 = vsyncpa [#allocation6], 0
    %9 = vsyncpa [#allocation4], 0
    // Predicated region
    $region2: #{tpu_custom_call.1} parent=1 // pred_check
      _
    $region3: #{tpu_custom_call.1} parent=1 // pred_check_branch
      %11 = sbr.rel (0) target = $region5
    $region4: #{tpu_custom_call.1} parent=1 // pred_region
      %13 = vsyncadd [#allocation3], 0
      %s15 = sshll.u32 %s0, 4
      %s16 = int_to_ptr.hbm [resolvable:$true] %s15
      %s17 = sshll.u32 [#allocation2], 4
      %s18 = int_to_ptr.vmem [resolvable:$true] %s17
      %20 = dma.hbm_to_vmem [thread:$0]  %s16, 64, %s18, [#allocation3]
    $region5: #{tpu_custom_call.1} parent=1 // pred_fallthru
      _
    // Predicated region
    $region6: #{tpu_custom_call.1} parent=1 // pred_check
      _
    $region7: #{tpu_custom_call.1} parent=1 // pred_check_branch
      %22 = sbr.rel (0) target = $region9
    $region8: #{tpu_custom_call.1} parent=1 // pred_region
      %24 = vsyncadd [#allocation6], 0
      %s25 = sshll.u32 %s1, 4
      %s26 = int_to_ptr.hbm [resolvable:$true] %s25
      %s27 = sshll.u32 [#allocation5], 4
      %s28 = int_to_ptr.vmem [resolvable:$true] %s27
      %33 = dma.hbm_to_vmem [thread:$0]  %s26, 1024, %s28, [#allocation6], 64, 64, 4
    $region9: #{tpu_custom_call.1} parent=1 // pred_fallthru
      _
    // Predicated region
    $region10: #{tpu_custom_call.1} parent=1 // pred_check
      _
    $region11: #{tpu_custom_call.1} parent=1 // pred_check_branch
      %35 = sbr.rel (0) target = $region13
    $region12: #{tpu_custom_call.1} parent=1 // pred_region
      %37 = dma.done [#allocation3], 64
    $region13: #{tpu_custom_call.1} parent=1 // pred_fallthru
      _
    // Predicated region
    $region14: #{tpu_custom_call.1} parent=1 // pred_check
      _
    $region15: #{tpu_custom_call.1} parent=1 // pred_check_branch
      %39 = sbr.rel (0) target = $region17
    $region16: #{tpu_custom_call.1} parent=1 // pred_region
      %41 = dma.done [#allocation6], 1024
    $region17: #{tpu_custom_call.1} parent=1 // pred_fallthru
      _
    %p42 = scmp.eq.s32.totalorder 0, 0
    // Predicated region
    $region18: #{tpu_custom_call.1} parent=1 // pred_check
      %p43 = pneg %p42
    $region19: #{tpu_custom_call.1} parent=1 // pred_check_branch
      %45 = sbr.rel (%p43) target = $region21
    $region20: #{tpu_custom_call.1} parent=1 // pred_region
      %46 = vst [vmem:[#allocation7] sm:$0xff] 0.0
    $region21: #{tpu_custom_call.1} parent=1 // pred_fallthru
      _
    %v47 = vld [vmem:[#allocation7] sm:$0xff]
    %v48 = vld [vmem:[#allocation2] sm:$0xf]
    %v49 = vld [vmem:[#allocation5] sm:$0xf]
    %v50 = vld [vmem:[#allocation5 + $0x4] sm:$0xf]
    %v51 = vld [vmem:[#allocation5 + $0x8] sm:$0xf]
    %v52 = vld [vmem:[#allocation5 + $0xc] sm:$0xf]
    %v53 = vld [vmem:[#allocation5 + $0x10] sm:$0xf]
    %v54 = vld [vmem:[#allocation5 + $0x14] sm:$0xf]
    %v55 = vld [vmem:[#allocation5 + $0x18] sm:$0xf]
    %v56 = vld [vmem:[#allocation5 + $0x1c] sm:$0xf]
    %v57 = vld [vmem:[#allocation5 + $0x20] sm:$0xf]
    %v58 = vld [vmem:[#allocation5 + $0x24] sm:$0xf]
    %v59 = vld [vmem:[#allocation5 + $0x28] sm:$0xf]
    %v60 = vld [vmem:[#allocation5 + $0x2c] sm:$0xf]
    %v61 = vld [vmem:[#allocation5 + $0x30] sm:$0xf]
    %v62 = vld [vmem:[#allocation5 + $0x34] sm:$0xf]
    %v63 = vld [vmem:[#allocation5 + $0x38] sm:$0xf]
    %v64 = vld [vmem:[#allocation5 + $0x3c] sm:$0xf]
    %v81 = vunpack.c.l.b16 %v49
    %v82 = vunpack.c.l.b16 %v50
    %v83 = vunpack.c.l.b16 %v51
    %v84 = vunpack.c.l.b16 %v52
    %v85 = vunpack.c.l.b16 %v53
    %v86 = vunpack.c.l.b16 %v54
    %v87 = vunpack.c.l.b16 %v55
    %v88 = vunpack.c.l.b16 %v56
    %v89 = vunpack.c.l.b16 %v57
    %v90 = vunpack.c.l.b16 %v58
    %v91 = vunpack.c.l.b16 %v59
    %v92 = vunpack.c.l.b16 %v60
    %v93 = vunpack.c.l.b16 %v61
    %v94 = vunpack.c.l.b16 %v62
    %v95 = vunpack.c.l.b16 %v63
    %v96 = vunpack.c.l.b16 %v64
    %v97 = vpack.c.b16 %v82, %v81
    %v98 = vpack.c.b16 %v84, %v83
    %v99 = vpack.c.b16 %v86, %v85
    %v100 = vpack.c.b16 %v88, %v87
    %v101 = vpack.c.b16 %v90, %v89
    %v102 = vpack.c.b16 %v92, %v91
    %v103 = vpack.c.b16 %v94, %v93
    %v104 = vpack.c.b16 %v96, %v95
    %113 = vmatpush.bf16.msra.mxu0 %v104
    %114 = vmatpush.bf16.msra.mxu0 %v103
    %115 = vmatpush.bf16.msra.mxu0 %v102
    %116 = vmatpush.bf16.msra.mxu0 %v101
    %117 = vmatpush.bf16.msra.mxu0 %v100
    %118 = vmatpush.bf16.msra.mxu0 %v99
    %119 = vmatpush.bf16.msra.mxu0 %v98
    %120 = vmatpush.bf16.msra.mxu0 %v97
    %121 = vmatmul.bf16.gmra.mxu0 %v48
    %v122 = vpop.f32.mrf.mxu0
    %v123 = vadd.f32 0.0, %v122
    %v124 = vpop.f32.mrf.mxu0
    %125 = vdwg.mxu0
    %v126 = vadd.f32 %v47, %v123
    %127 = vst [vmem:[#allocation7] sm:$0xff] %v126
    // Predicated region
    $region22: #{tpu_custom_call.1} parent=1 // pred_check
      _
    $region23: #{tpu_custom_call.1} parent=1 // pred_check_branch
      %129 = sbr.rel (0) target = $region25
    $region24: #{tpu_custom_call.1} parent=1 // pred_region
      %131 = vsyncadd [#allocation4], 0
      %s133 = sshll.u32 [#allocation7], 4
      %s134 = int_to_ptr.vmem [resolvable:$true] %s133
      %s135 = sshll.u32 %s2, 4
      %s136 = int_to_ptr.hbm [resolvable:$true] %s135
      %138 = dma.vmem_to_hbm [thread:$0]  %s134, 128, %s136, [#allocation4]
    $region25: #{tpu_custom_call.1} parent=1 // pred_fallthru
      _
    // Predicated region
    $region26: #{tpu_custom_call.1} parent=1 // pred_check
      _
    $region27: #{tpu_custom_call.1} parent=1 // pred_check_branch
      %140 = sbr.rel (0) target = $region29
    $region28: #{tpu_custom_call.1} parent=1 // pred_region
      %142 = dma.done [#allocation4], 128
    $region29: #{tpu_custom_call.1} parent=1 // pred_fallthru
      _
    %143 = vsyncpa [#allocation3], 1
    %144 = vsyncpa [#allocation6], 1
    %145 = vsyncpa [#allocation4], 1

</llo_original>
